<compile_context>
chip_gen: v5e
topology: v5e:2x2
jax: 0.10.0
libtpu: 0.0.40
codegen_flags: <defaults>
</compile_context>

<pallas_src>
import functools

import jax
import jax.numpy as jnp
from jax.experimental import pallas as pl
from jax.experimental.pallas import tpu as pltpu

EPS = 1e-5
LANE = 128
TM_CAP = 2048


def _fused_conv_bn_kernel(m_true, p_ref, w_ref, gb_ref, o_ref,
                          sum_sc, sq_sc, scale_sc, shift_sc):
    # grid = (pass, n, tile); pass 0 = stats, pass 1 = apply BN + store.
    pss = pl.program_id(0)
    n = pl.program_id(1)
    i = pl.program_id(2)
    is_first = jnp.logical_and(n == 0, i == 0)

    # MXU: [Cout, Kp] @ [Kp, TM] -> f32 [Cout, TM] (bf16 operands, f32 accumulation).
    y = jnp.dot(w_ref[...], p_ref[0], preferred_element_type=jnp.float32)

    @pl.when(pss == 0)
    def _():
        @pl.when(is_first)
        def _():
            sum_sc[...] = jnp.zeros_like(sum_sc)
            sq_sc[...] = jnp.zeros_like(sq_sc)
        sum_sc[...] += jnp.sum(y, axis=1, keepdims=True)
        sq_sc[...] += jnp.sum(y * y, axis=1, keepdims=True)

    @pl.when(pss == 1)
    def _():
        @pl.when(is_first)
        def _():
            inv_m = 1.0 / float(m_true)
            mean = sum_sc[...] * inv_m
            # Clamp: guards E[y^2] - E[y]^2 catastrophic cancellation.
            var = jnp.maximum(sq_sc[...] * inv_m - mean * mean, 0.0)
            gamma = gb_ref[0]                       # [Cout, 1]
            beta = gb_ref[1]                        # [Cout, 1]
            sc = gamma * jax.lax.rsqrt(var + EPS)
            scale_sc[...] = sc
            shift_sc[...] = beta - mean * sc
        o_ref[0] = (y * scale_sc[...] + shift_sc[...]).astype(o_ref.dtype)


def mm_forward(x_nchw, w_oihw, bias, gamma, beta):
    """x_nchw: [N, 3, H, W] f32. Returns [N, 32, Hout, Wout] f32 (NCHW)."""
    # Training-mode BN with batch stats: the per-channel conv bias is exactly
    # cancelled by the mean subtraction, so it is intentionally unused.
    del bias
    N, Cin, H, W = x_nchw.shape
    Cout, _, KH, KW = w_oihw.shape
    stride, pad = 2, 1
    Hout = (H + 2 * pad - KH) // stride + 1
    Wout = (W + 2 * pad - KW) // stride + 1
    HW = Hout * Wout
    M = N * HW                       # true element count per channel (for batch stats)
    K = KH * KW * Cin
    Kp = 32                          # pad K=27 -> 32 (sublane friendly)

    # Tiles per image along the lane axis; big tiles, minimal padding.
    nt = max(1, pl.cdiv(HW, TM_CAP))
    TM = max(LANE, pl.cdiv(HW, nt * LANE) * LANE)
    HWp = nt * TM

    # ---- layout glue (XLA): im2col into [N, Kp, HWp] bf16, lane-dense on HW ----
    x_nhwc = jnp.transpose(x_nchw, (0, 2, 3, 1))
    x_p = jnp.pad(x_nhwc, ((0, 0), (pad, pad), (pad, pad), (0, 0)))
    cols = []
    for kh in range(KH):
        for kw in range(KW):
            cols.append(x_p[:, kh::stride, kw::stride, :][:, :Hout, :Wout, :])
    patches = jnp.stack(cols, axis=3).reshape(N, HW, K)           # (kh, kw, cin) order
    patches_t = jnp.zeros((N, Kp, HWp), jnp.bfloat16)
    patches_t = patches_t.at[:, :K, :HW].set(
        jnp.transpose(patches, (0, 2, 1)).astype(jnp.bfloat16))

    w_mat = jnp.transpose(w_oihw, (2, 3, 1, 0)).reshape(K, Cout)  # matches patch order
    w_t = jnp.zeros((Cout, Kp), jnp.bfloat16).at[:, :K].set(
        w_mat.T.astype(jnp.bfloat16))
    gb = jnp.stack([gamma, beta]).reshape(2, Cout, 1).astype(jnp.float32)

    flops = 2 * 2 * N * HWp * Kp * Cout
    bytes_accessed = (2 * patches_t.size * 2 + w_t.size * 2 + gb.size * 4
                      + N * Cout * HWp * 4)

    out3 = pl.pallas_call(
        functools.partial(_fused_conv_bn_kernel, M),
        grid=(2, N, nt),
        out_shape=jax.ShapeDtypeStruct((N, Cout, HWp), jnp.float32),
        in_specs=[
            pl.BlockSpec((1, Kp, TM), lambda p, n, i: (n, 0, i)),
            pl.BlockSpec((Cout, Kp), lambda p, n, i: (0, 0)),        # grid-invariant
            pl.BlockSpec((2, Cout, 1), lambda p, n, i: (0, 0, 0)),   # grid-invariant
        ],
        # During the stats pass (p==0) the output block index is pinned to (0,0,0),
        # so no unwritten/garbage tiles are flushed; pass 1 walks every block once.
        out_specs=pl.BlockSpec((1, Cout, TM), lambda p, n, i: (n * p, 0, i * p)),
        scratch_shapes=[
            pltpu.VMEM((Cout, 1), jnp.float32),   # running sum
            pltpu.VMEM((Cout, 1), jnp.float32),   # running sum of squares
            pltpu.VMEM((Cout, 1), jnp.float32),   # fused BN scale
            pltpu.VMEM((Cout, 1), jnp.float32),   # fused BN shift
        ],
        compiler_params=pltpu.CompilerParams(
            dimension_semantics=("arbitrary", "arbitrary", "arbitrary")),
        cost_estimate=pl.CostEstimate(flops=flops, transcendentals=0,
                                      bytes_accessed=bytes_accessed),
    )(patches_t, w_t, gb)

    # Batch-grouped output: only a slice + reshape, no full NCHW transpose pass.
    return out3[:, :, :HW].reshape(N, Cout, Hout, Wout)


if __name__ == "__main__":
    key = jax.random.PRNGKey(0)
    kx, kw, kb = jax.random.split(key, 3)

    # Small shapes consistent with the module: N=2, Cin=3, H=W=16.
    N, Cin, H, W = 2, 3, 16, 16
    Cout, KH, KW = 32, 3, 3

    x = jax.random.normal(kx, (N, Cin, H, W), dtype=jnp.float32)
    fan_in = Cin * KH * KW
    w = jax.random.normal(kw, (Cout, Cin, KH, KW), dtype=jnp.float32) * (1.0 / fan_in) ** 0.5
    b = jax.random.normal(kb, (Cout,), dtype=jnp.float32) * 0.1
    gamma = jnp.ones((Cout,), dtype=jnp.float32)   # BatchNorm2d weight
    beta = jnp.zeros((Cout,), dtype=jnp.float32)   # BatchNorm2d bias

    out = jax.jit(mm_forward)(x, w, b, gamma, beta)
    jax.block_until_ready(out)
    assert out.shape == (N, Cout, H // 2, W // 2), out.shape

    # Correctness check against lax conv + training-mode batch-norm (f32 reference).
    y_ref = jax.lax.conv_general_dilated(
        x, w, window_strides=(2, 2), padding=((1, 1), (1, 1)),
        dimension_numbers=("NCHW", "OIHW", "NCHW")) + b.reshape(1, Cout, 1, 1)
    mu = y_ref.mean(axis=(0, 2, 3), keepdims=True)
    va = ((y_ref - mu) ** 2).mean(axis=(0, 2, 3), keepdims=True)
    ref = (y_ref - mu) * jax.lax.rsqrt(va + EPS) * gamma.reshape(1, Cout, 1, 1) \
        + beta.reshape(1, Cout, 1, 1)
    max_err = float(jnp.max(jnp.abs(out - ref)))
    # bf16 MXU operands with f32 accumulation: rounding-only error on a 27-tap,
    # unit-variance (post-BN) output; comfortably under 3e-2.
    assert max_err < 3e-2, max_err

    print("KERNEL_OK")
</pallas_src>

<mosaic_0001>
module attributes {stable_mosaic.version = 11 : i64} {
  func.func @_fused_conv_bn_kernel(%arg0: i32, %arg1: i32, %arg2: i32, %arg3: memref<1x32x128xbf16, #tpu.memory_space<vmem>>, %arg4: memref<32x32xbf16, #tpu.memory_space<vmem>>, %arg5: memref<2x32x1xf32, #tpu.memory_space<vmem>>, %arg6: memref<1x32x128xf32, #tpu.memory_space<vmem>>, %arg7: memref<32x1xf32, #tpu.memory_space<vmem>>, %arg8: memref<32x1xf32, #tpu.memory_space<vmem>>, %arg9: memref<32x1xf32, #tpu.memory_space<vmem>>, %arg10: memref<32x1xf32, #tpu.memory_space<vmem>>) attributes {dimension_semantics = [#tpu.dimension_semantics<arbitrary>, #tpu.dimension_semantics<arbitrary>, #tpu.dimension_semantics<arbitrary>], iteration_bounds = array<i64: 2, 2, 1>, scalar_prefetch = 0 : i64, scratch_operands = 4 : i64, tpu.core_type = #tpu.core_type<tc>, window_params = [{transform_indices = @transform_0, window_bounds = array<i64: 1, 32, 128>}, {pipeline_mode = #tpu.pipeline_mode<synchronous>, transform_indices = @transform_1, window_bounds = array<i64: 32, 32>}, {pipeline_mode = #tpu.pipeline_mode<synchronous>, transform_indices = @transform_2, window_bounds = array<i64: 2, 32, 1>}, {transform_indices = @transform_3, window_bounds = array<i64: 1, 32, 128>}]} {
    %c0_i32 = arith.constant 0 : i32
    %0 = arith.cmpi eq, %arg1, %c0_i32 : i32
    %c0_i32_0 = arith.constant 0 : i32
    %1 = arith.cmpi eq, %arg2, %c0_i32_0 : i32
    %2 = arith.andi %0, %1 : i1
    %c0 = arith.constant 0 : index
    %c0_1 = arith.constant 0 : index
    %3 = vector.load %arg4[%c0, %c0_1] : memref<32x32xbf16, #tpu.memory_space<vmem>>, vector<32x32xbf16>
    %c0_2 = arith.constant 0 : index
    %c0_3 = arith.constant 0 : index
    %c0_4 = arith.constant 0 : index
    %4 = vector.load %arg3[%c0_2, %c0_3, %c0_4] : memref<1x32x128xbf16, #tpu.memory_space<vmem>>, vector<1x32x128xbf16>
    %5 = vector.shape_cast %4 : vector<1x32x128xbf16> to vector<32x128xbf16>
    %cst = arith.constant dense<0.000000e+00> : vector<32x128xf32>
    %6 = tpu.matmul %3, %5, %cst {dimension_numbers = #tpu.dot_dimension_numbers<[1], [0], [0], [1], [0, 0, 1, 1], [], []>} : vector<32x32xbf16>, vector<32x128xbf16>, vector<32x128xf32> -> vector<32x128xf32>
    %c0_i32_5 = arith.constant 0 : i32
    %7 = arith.cmpi eq, %arg0, %c0_i32_5 : i32
    %8 = arith.extui %7 : i1 to i32
    %c0_i32_6 = arith.constant 0 : i32
    %9 = arith.cmpi ne, %8, %c0_i32_6 : i32
    scf.if %9 {
      %13 = arith.extui %2 : i1 to i32
      %c0_i32_8 = arith.constant 0 : i32
      %14 = arith.cmpi ne, %13, %c0_i32_8 : i32
      scf.if %14 {
        %cst_19 = arith.constant 0.000000e+00 : f32
        %26 = vector.broadcast %cst_19 : f32 to vector<32x1xf32>
        %c0_20 = arith.constant 0 : index
        %c0_21 = arith.constant 0 : index
        %27 = vector.load %arg7[%c0_20, %c0_21] : memref<32x1xf32, #tpu.memory_space<vmem>>, vector<32x1xf32>
        tpu.vector_store %arg7[%c0_20, %c0_21], %26 {strides = array<i32>} : memref<32x1xf32, #tpu.memory_space<vmem>>, vector<32x1xf32>,
        %cst_22 = arith.constant 0.000000e+00 : f32
        %28 = vector.broadcast %cst_22 : f32 to vector<32x1xf32>
        %c0_23 = arith.constant 0 : index
        %c0_24 = arith.constant 0 : index
        %29 = vector.load %arg8[%c0_23, %c0_24] : memref<32x1xf32, #tpu.memory_space<vmem>>, vector<32x1xf32>
        tpu.vector_store %arg8[%c0_23, %c0_24], %28 {strides = array<i32>} : memref<32x1xf32, #tpu.memory_space<vmem>>, vector<32x1xf32>,
      } else {
      }
      %c0_9 = arith.constant 0 : index
      %c0_10 = arith.constant 0 : index
      %15 = vector.load %arg7[%c0_9, %c0_10] : memref<32x1xf32, #tpu.memory_space<vmem>>, vector<32x1xf32>
      %cst_11 = arith.constant dense<0.000000e+00> : vector<32xf32>
      %16 = vector.multi_reduction <add>, %6, %cst_11 [1] : vector<32x128xf32> to vector<32xf32>
      %17 = vector.shape_cast %16 : vector<32xf32> to vector<32x1xf32>
      %18 = arith.addf %15, %17 : vector<32x1xf32>
      %c0_12 = arith.constant 0 : index
      %c0_13 = arith.constant 0 : index
      %19 = vector.load %arg7[%c0_12, %c0_13] : memref<32x1xf32, #tpu.memory_space<vmem>>, vector<32x1xf32>
      tpu.vector_store %arg7[%c0_12, %c0_13], %18 {strides = array<i32>} : memref<32x1xf32, #tpu.memory_space<vmem>>, vector<32x1xf32>,
      %c0_14 = arith.constant 0 : index
      %c0_15 = arith.constant 0 : index
      %20 = vector.load %arg8[%c0_14, %c0_15] : memref<32x1xf32, #tpu.memory_space<vmem>>, vector<32x1xf32>
      %21 = arith.mulf %6, %6 : vector<32x128xf32>
      %cst_16 = arith.constant dense<0.000000e+00> : vector<32xf32>
      %22 = vector.multi_reduction <add>, %21, %cst_16 [1] : vector<32x128xf32> to vector<32xf32>
      %23 = vector.shape_cast %22 : vector<32xf32> to vector<32x1xf32>
      %24 = arith.addf %20, %23 : vector<32x1xf32>
      %c0_17 = arith.constant 0 : index
      %c0_18 = arith.constant 0 : index
      %25 = vector.load %arg8[%c0_17, %c0_18] : memref<32x1xf32, #tpu.memory_space<vmem>>, vector<32x1xf32>
      tpu.vector_store %arg8[%c0_17, %c0_18], %24 {strides = array<i32>} : memref<32x1xf32, #tpu.memory_space<vmem>>, vector<32x1xf32>,
    } else {
    }
    %c1_i32 = arith.constant 1 : i32
    %10 = arith.cmpi eq, %arg0, %c1_i32 : i32
    %11 = arith.extui %10 : i1 to i32
    %c0_i32_7 = arith.constant 0 : i32
    %12 = arith.cmpi ne, %11, %c0_i32_7 : i32
    scf.if %12 {
      %13 = arith.extui %2 : i1 to i32
      %c0_i32_8 = arith.constant 0 : i32
      %14 = arith.cmpi ne, %13, %c0_i32_8 : i32
      scf.if %14 {
        %c0_16 = arith.constant 0 : index
        %c0_17 = arith.constant 0 : index
        %24 = vector.load %arg7[%c0_16, %c0_17] : memref<32x1xf32, #tpu.memory_space<vmem>>, vector<32x1xf32>
        %cst_18 = arith.constant 7.812500e-03 : f32
        %25 = vector.broadcast %cst_18 : f32 to vector<32x1xf32>
        %26 = arith.mulf %24, %25 : vector<32x1xf32>
        %c0_19 = arith.constant 0 : index
        %c0_20 = arith.constant 0 : index
        %27 = vector.load %arg8[%c0_19, %c0_20] : memref<32x1xf32, #tpu.memory_space<vmem>>, vector<32x1xf32>
        %cst_21 = arith.constant 7.812500e-03 : f32
        %28 = vector.broadcast %cst_21 : f32 to vector<32x1xf32>
        %29 = arith.mulf %27, %28 : vector<32x1xf32>
        %30 = arith.mulf %26, %26 : vector<32x1xf32>
        %31 = arith.subf %29, %30 : vector<32x1xf32>
        %cst_22 = arith.constant 0.000000e+00 : f32
        %32 = vector.broadcast %cst_22 : f32 to vector<32x1xf32>
        %33 = arith.maximumf %31, %32 : vector<32x1xf32>
        %c0_23 = arith.constant 0 : index
        %c0_24 = arith.constant 0 : index
        %c0_25 = arith.constant 0 : index
        %34 = vector.load %arg5[%c0_23, %c0_24, %c0_25] : memref<2x32x1xf32, #tpu.memory_space<vmem>>, vector<1x32x1xf32>
        %35 = vector.shape_cast %34 : vector<1x32x1xf32> to vector<32x1xf32>
        %c1 = arith.constant 1 : index
        %c0_26 = arith.constant 0 : index
        %c0_27 = arith.constant 0 : index
        %36 = vector.load %arg5[%c1, %c0_26, %c0_27] : memref<2x32x1xf32, #tpu.memory_space<vmem>>, vector<1x32x1xf32>
        %37 = vector.shape_cast %36 : vector<1x32x1xf32> to vector<32x1xf32>
        %cst_28 = arith.constant 9.99999974E-6 : f32
        %38 = vector.broadcast %cst_28 : f32 to vector<32x1xf32>
        %39 = arith.addf %33, %38 : vector<32x1xf32>
        %40 = math.rsqrt %39 : vector<32x1xf32>
        %41 = arith.mulf %35, %40 : vector<32x1xf32>
        %c0_29 = arith.constant 0 : index
        %c0_30 = arith.constant 0 : index
        %42 = vector.load %arg9[%c0_29, %c0_30] : memref<32x1xf32, #tpu.memory_space<vmem>>, vector<32x1xf32>
        tpu.vector_store %arg9[%c0_29, %c0_30], %41 {strides = array<i32>} : memref<32x1xf32, #tpu.memory_space<vmem>>, vector<32x1xf32>,
        %43 = arith.mulf %26, %41 : vector<32x1xf32>
        %44 = arith.subf %37, %43 : vector<32x1xf32>
        %c0_31 = arith.constant 0 : index
        %c0_32 = arith.constant 0 : index
        %45 = vector.load %arg10[%c0_31, %c0_32] : memref<32x1xf32, #tpu.memory_space<vmem>>, vector<32x1xf32>
        tpu.vector_store %arg10[%c0_31, %c0_32], %44 {strides = array<i32>} : memref<32x1xf32, #tpu.memory_space<vmem>>, vector<32x1xf32>,
      } else {
      }
      %c0_9 = arith.constant 0 : index
      %c0_10 = arith.constant 0 : index
      %15 = vector.load %arg9[%c0_9, %c0_10] : memref<32x1xf32, #tpu.memory_space<vmem>>, vector<32x1xf32>
      %16 = vector.broadcast %15 : vector<32x1xf32> to vector<32x128xf32>
      %17 = arith.mulf %6, %16 : vector<32x128xf32>
      %c0_11 = arith.constant 0 : index
      %c0_12 = arith.constant 0 : index
      %18 = vector.load %arg10[%c0_11, %c0_12] : memref<32x1xf32, #tpu.memory_space<vmem>>, vector<32x1xf32>
      %19 = vector.broadcast %18 : vector<32x1xf32> to vector<32x128xf32>
      %20 = arith.addf %17, %19 : vector<32x128xf32>
      %c0_13 = arith.constant 0 : index
      %c0_14 = arith.constant 0 : index
      %c0_15 = arith.constant 0 : index
      %21 = vector.load %arg6[%c0_13, %c0_14, %c0_15] : memref<1x32x128xf32, #tpu.memory_space<vmem>>, vector<1x32x128xf32>
      %22 = vector.shape_cast %21 : vector<1x32x128xf32> to vector<32x128xf32>
      %23 = vector.shape_cast %20 : vector<32x128xf32> to vector<1x32x128xf32>
      tpu.vector_store %arg6[%c0_13, %c0_14, %c0_15], %23 {strides = array<i32>} : memref<1x32x128xf32, #tpu.memory_space<vmem>>, vector<1x32x128xf32>,
    } else {
    }
    return
  }
  func.func @transform_0(%arg0: i32, %arg1: i32, %arg2: i32) -> (i32, i32, i32) {
    %c0_i32 = arith.constant 0 : i32
    %c0_i32_0 = arith.constant 0 : i32
    return %arg1, %c0_i32, %arg2 : i32, i32, i32
  }
  func.func @transform_1(%arg0: i32, %arg1: i32, %arg2: i32) -> (i32, i32) {
    %c0_i32 = arith.constant 0 : i32
    %c0_i32_0 = arith.constant 0 : i32
    %c0_i32_1 = arith.constant 0 : i32
    return %c0_i32, %c0_i32_0 : i32, i32
  }
  func.func @transform_2(%arg0: i32, %arg1: i32, %arg2: i32) -> (i32, i32, i32) {
    %c0_i32 = arith.constant 0 : i32
    %c0_i32_0 = arith.constant 0 : i32
    %c0_i32_1 = arith.constant 0 : i32
    %c0_i32_2 = arith.constant 0 : i32
    return %c0_i32, %c0_i32_0, %c0_i32_1 : i32, i32, i32
  }
  func.func @transform_3(%arg0: i32, %arg1: i32, %arg2: i32) -> (i32, i32, i32) {
    %0 = arith.muli %arg1, %arg0 : i32
    %1 = arith.muli %arg2, %arg0 : i32
    %c0_i32 = arith.constant 0 : i32
    %c0_i32_0 = arith.constant 0 : i32
    return %0, %c0_i32, %1 : i32, i32, i32
  }
}

</mosaic_0001>

<llo_original>
// kernel: mm_forward.1
$region0: #{mm_forward.1}
  #allocation0 [shape = 'u32[]', space=smem, size = 0x4, offset = 0x4, fixed_abs, tag = 'smem constant byte address 0x4 - core index']
  #allocation1 [shape = 'u32[72,128]{1,0:T(1,128)}', space=vmem, size = 0x9000, scoped, tag = 'internal scratch']
  #allocation2 [shape = 'f32[32,1]{1,0:T(8,128)}', space=vmem, size = 0x4000, scoped, tag = 'scratch operand']
  #allocation3 [shape = 'f32[32,1]{1,0:T(8,128)}', space=vmem, size = 0x4000, scoped, tag = 'scratch operand']
  #allocation4 [shape = 'f32[32,1]{1,0:T(8,128)}', space=vmem, size = 0x4000, scoped, tag = 'scratch operand']
  #allocation5 [shape = 'f32[32,1]{1,0:T(8,128)}', space=vmem, size = 0x4000, scoped, tag = 'scratch operand']
  %s0 = inlined_call_operand.vmem [shape: bf16[2,32,128], index: 0, kind: input, shape index: {}]
  %s1 = inlined_call_operand.vmem [shape: bf16[32,32], index: 1, kind: input, shape index: {}]
  %s2 = inlined_call_operand.vmem [shape: f32[2,32,1], index: 2, kind: input, shape index: {}]
  %s3 = inlined_call_operand.vmem [shape: f32[2,32,128], index: 3, kind: output, shape index: {}]
  %s4 = sld [smem:[#allocation0]]
  $region61: #{mm_forward.1} parent=0
    _
  %s6 = ssub.s32 1, %s4
  %s7 = scalar_select 0, %s6, %s4
  loop: start=0, step=1, limit=6
  $region2: #{mm_forward.1} parent=0 // loop_pre_header
    _
  $region3: #{mm_forward.1} parent=0 // loop_header
    %s9 = sphi 0, %s13
    %p10 = scmp.ge.s32.totalorder %s9, 6
    %s16 = sphi 0, %s35
    %s17 = sphi 0, %s31
    %s18 = sphi 0, %s27
    %s19 = sphi 0, %s16
    %s20 = sphi 0, %s17
    %s21 = sphi 0, %s18
    %s22 = sphi 0, %s19
    %s23 = sphi 0, %s20
    %s24 = sphi 0, %s21
    %s40 = sphi 0, %s42
    %s43 = sphi 0, %s40
    %s44 = sphi 0, %s43
    %s60 = sphi 0, %s44
    %s64 = sphi 0, %s64
    %s66 = sphi 0, %s64
    %s67 = sphi 0, %s66
    %s81 = sphi 0, %s67
    %s85 = sphi 0, %s85
    %s87 = sphi 0, %s85
    %s88 = sphi 0, %s87
    %s102 = sphi 0, %s88
    %s114 = sphi 0, %s116
    %s117 = sphi 0, %s114
    %s118 = sphi 0, %s117
    %s134 = sphi 0, %s118
  $region4: #{mm_forward.1} parent=0 // loop_header_branch
    %12 = sbr.rel (%p10) target = $region8
  $region5: #{mm_forward.1} parent=0 // loop_body
    %s14 = ssub.s32 %s9, 1
    %s15 = ssub.s32 %s9, 2
    %s25 = sadd.s32 1, %s18
    %p26 = scmp.ge.s32.totalorder %s25, 1
    %s27 = scalar_select %p26, 0, %s25
    %s28 = sadd.s32 1, %s17
    %s29 = scalar_select %p26, %s28, %s17
    %p30 = scmp.ge.s32.totalorder %s29, 2
    %s31 = scalar_select %p30, 0, %s29
    %s32 = sadd.s32 1, %s16
    %s33 = scalar_select %p30, %s32, %s16
    %p34 = scmp.ge.s32.totalorder %s33, 2
    %s35 = scalar_select %p34, 0, %s33
    %s36 = ssub.s32 %s17, %s31
    %s37 = ssub.s32 %s18, %s27
    %s38 = sor.u32 %s36, %s37
    %p39 = scmp.eq.s32.totalorder %s38, 0
    %s41 = sadd.s32 %s40, 1
    %s42 = scalar_select %p39, %s40, %s41
    %p45 = pneg %p39
    %p46 = scmp.eq.s32.totalorder %s9, 3
    %p47 = por %p45, %p46
    %p48 = scmp.ne.s32.totalorder %s40, %s43
    %p49 = scmp.eq.s32.totalorder %s9, 0
    %p50 = por %p48, %p49
    %p51 = scmp.ne.s32.totalorder %s40, %s43
    %p52 = scmp.eq.s32.totalorder %s14, 3
    %p53 = por %p51, %p52
    %p54 = scmp.ne.s32.totalorder %s43, %s44
    %p55 = scmp.eq.s32.totalorder %s14, 0
    %p56 = por %p54, %p55
    %p57 = scmp.ne.s32.totalorder %s43, %s44
    %p58 = scmp.eq.s32.totalorder %s15, 3
    %p59 = por %p57, %p58
    %p61 = scmp.ne.s32.totalorder %s44, %s60
    %p62 = scmp.eq.s32.totalorder %s15, 0
    %p63 = por %p61, %p62
    %s65 = sadd.s32 %s64, 1
    %p68 = scmp.eq.s32.totalorder %s9, 3
    %p69 = scmp.ne.s32.totalorder %s64, %s66
    %p70 = scmp.eq.s32.totalorder %s9, 0
    %p71 = por %p69, %p70
    %p72 = scmp.ne.s32.totalorder %s64, %s66
    %p73 = scmp.eq.s32.totalorder %s14, 3
    %p74 = por %p72, %p73
    %p75 = scmp.ne.s32.totalorder %s66, %s67
    %p76 = scmp.eq.s32.totalorder %s14, 0
    %p77 = por %p75, %p76
    %p78 = scmp.ne.s32.totalorder %s66, %s67
    %p79 = scmp.eq.s32.totalorder %s15, 3
    %p80 = por %p78, %p79
    %p82 = scmp.ne.s32.totalorder %s67, %s81
    %p83 = scmp.eq.s32.totalorder %s15, 0
    %p84 = por %p82, %p83
    %s86 = sadd.s32 %s85, 1
    %p89 = scmp.eq.s32.totalorder %s9, 3
    %p90 = scmp.ne.s32.totalorder %s85, %s87
    %p91 = scmp.eq.s32.totalorder %s9, 0
    %p92 = por %p90, %p91
    %p93 = scmp.ne.s32.totalorder %s85, %s87
    %p94 = scmp.eq.s32.totalorder %s14, 3
    %p95 = por %p93, %p94
    %p96 = scmp.ne.s32.totalorder %s87, %s88
    %p97 = scmp.eq.s32.totalorder %s14, 0
    %p98 = por %p96, %p97
    %p99 = scmp.ne.s32.totalorder %s87, %s88
    %p100 = scmp.eq.s32.totalorder %s15, 3
    %p101 = por %p99, %p100
    %p103 = scmp.ne.s32.totalorder %s88, %s102
    %p104 = scmp.eq.s32.totalorder %s15, 0
    %p105 = por %p103, %p104
    %s106 = smul.u32 %s17, %s16
    %s107 = smul.u32 %s18, %s16
    %s108 = smul.u32 %s31, %s35
    %s109 = smul.u32 %s27, %s35
    %s110 = ssub.s32 %s106, %s108
    %s111 = ssub.s32 %s107, %s109
    %s112 = sor.u32 %s110, %s111
    %p113 = scmp.eq.s32.totalorder %s112, 0
    %s115 = sadd.s32 %s114, 1
    %s116 = scalar_select %p113, %s114, %s115
    %p119 = pneg %p113
    %p120 = scmp.eq.s32.totalorder %s9, 3
    %p121 = por %p119, %p120
    %p122 = scmp.ne.s32.totalorder %s114, %s117
    %p123 = scmp.eq.s32.totalorder %s9, 0
    %p124 = por %p122, %p123
    %p125 = scmp.ne.s32.totalorder %s114, %s117
    %p126 = scmp.eq.s32.totalorder %s14, 3
    %p127 = por %p125, %p126
    %p128 = scmp.ne.s32.totalorder %s117, %s118
    %p129 = scmp.eq.s32.totalorder %s14, 0
    %p130 = por %p128, %p129
    %p131 = scmp.ne.s32.totalorder %s117, %s118
    %p132 = scmp.eq.s32.totalorder %s15, 3
    %p133 = por %p131, %p132
    %p135 = scmp.ne.s32.totalorder %s118, %s134
    %p136 = scmp.eq.s32.totalorder %s15, 0
    %p137 = por %p135, %p136
    %p138 = scmp.le.s32.totalorder 1, %s9
    %p139 = scmp.lt.s32.totalorder %s9, 5
    %p140 = pnand %p138, %p139
    %p141 = pneg %p140
    // Predicated region
    $region9: #{mm_forward.1} parent=5 // pred_check
      _
    $region10: #{mm_forward.1} parent=5 // pred_check_branch
      %143 = sbr.rel (%p140) target = $region12
    $region11: #{mm_forward.1} parent=5 // pred_region
      %s144 = ssub.s32 %s9, 1
      // Predicated region
      $region13: #{mm_forward.1} parent=11 // pred_check
        %p145 = pneg %p77
      $region14: #{mm_forward.1} parent=11 // pred_check_branch
        %147 = sbr.rel (%p145) target = $region16
      $region15: #{mm_forward.1} parent=11 // pred_region
        _
      $region16: #{mm_forward.1} parent=11 // pred_fallthru
        _
      // Predicated region
      $region17: #{mm_forward.1} parent=11 // pred_check
        %p148 = pneg %p98
      $region18: #{mm_forward.1} parent=11 // pred_check_branch
        %150 = sbr.rel (%p148) target = $region20
      $region19: #{mm_forward.1} parent=11 // pred_region
        _
      $region20: #{mm_forward.1} parent=11 // pred_fallthru
        _
    $region12: #{mm_forward.1} parent=5 // pred_fallthru
      _
    %p151 = scmp.lt.s32.totalorder %s9, 4
    // Predicated region
    $region21: #{mm_forward.1} parent=5 // pred_check
      %p152 = pneg %p151
    $region22: #{mm_forward.1} parent=5 // pred_check_branch
      %154 = sbr.rel (%p152) target = $region24
    $region23: #{mm_forward.1} parent=5 // pred_region
      // Predicated region
      $region25: #{mm_forward.1} parent=23 // pred_check
        %p155 = pneg %p50
      $region26: #{mm_forward.1} parent=23 // pred_check_branch
        %157 = sbr.rel (%p155) target = $region28
      $region27: #{mm_forward.1} parent=23 // pred_region
        %p158 = scmp.lt.s32.totalorder %s17, 1
        %s159 = scalar_select %p158, %s17, 1
        %p160 = scmp.lt.s32.totalorder %s18, 0
        %s161 = scalar_select %p160, %s18, 0
        %s162 = smul.addr %s159, 4
        %s163 = sadd.s32 %s161, %s162
        %s164 = smul.addr %s163, 4
        %s165 = scalar_lea.vmem %s0, %s164
      $region28: #{mm_forward.1} parent=23 // pred_fallthru
        _
    $region24: #{mm_forward.1} parent=5 // pred_fallthru
      _
    %p166 = scmp.le.s32.totalorder 1, %s9
    %p167 = scmp.lt.s32.totalorder %s9, 5
    %p168 = pnand %p166, %p167
    %p169 = pneg %p168
    // Predicated region
    $region29: #{mm_forward.1} parent=5 // pred_check
      _
    $region30: #{mm_forward.1} parent=5 // pred_check_branch
      %171 = sbr.rel (%p168) target = $region32
    $region31: #{mm_forward.1} parent=5 // pred_region
      %s172 = ssub.s32 %s9, 1
      %p173 = scmp.lt.s32.totalorder %s20, 1
      %s174 = scalar_select %p173, %s20, 1
      %p175 = scmp.lt.s32.totalorder %s21, 0
      %s176 = scalar_select %p175, %s21, 0
      %s177 = smul.addr %s174, 4
      %s178 = sadd.s32 %s176, %s177
      %s179 = smul.addr %s178, 4
      %s180 = scalar_lea.vmem %s0, %s179
      %p181 = pneg %p56
      %p182 = pneg %p53
      %p183 = pneg %p77
      %p184 = pneg %p74
      %p185 = pneg %p98
      %p186 = pneg %p95
      %p187 = pneg %p130
      %p188 = pneg %p127
      %s189 = smul.u32 %s20, %s19
      %s190 = smul.u32 %s21, %s19
      %p191 = scmp.lt.s32.totalorder %s189, 1
      %s192 = scalar_select %p191, %s189, 1
      %p193 = scmp.lt.s32.totalorder %s190, 0
      %s194 = scalar_select %p193, %s190, 0
      %s195 = smul.addr %s192, 4
      %s196 = sadd.s32 %s194, %s195
      %s197 = smul.addr %s196, 8
      %s198 = scalar_lea.vmem %s3, %s197
      %p199 = scmp.lt.s32.totalorder %s20, 1
      %s200 = scalar_select %p199, %s20, 1
      %p201 = scmp.lt.s32.totalorder %s21, 0
      %s202 = scalar_select %p201, %s21, 0
      %s203 = smul.addr %s200, 4
      %s204 = sadd.s32 %s202, %s203
      %s205 = smul.addr %s204, 4
      %s206 = scalar_lea.vmem %s0, %s205
      %s207 = smul.u32 %s20, %s19
      %s208 = smul.u32 %s21, %s19
      %p209 = scmp.lt.s32.totalorder %s207, 1
      %s210 = scalar_select %p209, %s207, 1
      %p211 = scmp.lt.s32.totalorder %s208, 0
      %s212 = scalar_select %p211, %s208, 0
      %s213 = smul.addr %s210, 4
      %s214 = sadd.s32 %s212, %s213
      %s215 = smul.addr %s214, 8
      %s216 = scalar_lea.vmem %s3, %s215
      %s217 = smul.u32 %s20, %s19
      %s218 = smul.u32 %s21, %s19
      %p220 = scmp.eq.s32.totalorder %s20, 0
      %p221 = scmp.eq.s32.totalorder %s21, 0
      %p222 = pnand %p220, %p221
      %p223 = pneg %p222
      %v224 = vld [vmem:[%s1] sm:$0xf]
      %v225 = vld [vmem:[%s1 + $0x4] sm:$0xf]
      %v226 = vld [vmem:[%s1 + $0x8] sm:$0xf]
      %v227 = vld [vmem:[%s1 + $0xc] sm:$0xf]
      %v228 = vld [vmem:[%s206] sm:$0xf]
      %v229 = vld [vmem:[%s206 + $0x4] sm:$0xf]
      %v230 = vld [vmem:[%s206 + $0x8] sm:$0xf]
      %v231 = vld [vmem:[%s206 + $0xc] sm:$0xf]
      %v236 = vunpack.c.l.b16 %v224
      %v237 = vunpack.c.l.b16 %v225
      %v238 = vunpack.c.l.b16 %v226
      %v239 = vunpack.c.l.b16 %v227
      %v240 = vpack.c.b16 %v237, %v236
      %v241 = vpack.c.b16 %v239, %v238
      %v246 = vunpack.c.l.b16 %v228
      %v247 = vunpack.c.l.b16 %v229
      %v248 = vunpack.c.l.b16 %v230
      %v249 = vunpack.c.l.b16 %v231
      %v250 = vpack.c.b16 %v247, %v246
      %v251 = vpack.c.b16 %v249, %v248
      %vm254 = vcmask 261120
      %v256 = vsel %vm254, %v240, 0
      %v259 = vsel %vm254, %v241, 0
      %261 = vmatpush.bf16.msra.mxu0 0
      %262 = vmatpush.bf16.msra.mxu0 0
      %263 = vmatpush.bf16.msra.mxu0 0
      %264 = vmatpush.bf16.msra.mxu0 0
      %265 = vmatpush.bf16.msra.mxu0 0
      %266 = vmatpush.bf16.msra.mxu0 0
      %267 = vmatpush.bf16.msra.mxu0 %v251
      %268 = vmatpush.bf16.msra.mxu0 %v250
      %269 = vmatmul.bf16.gmra.mxu0 %v256
      %v270 = vpop.f32.mrf.mxu0
      %v271 = vadd.f32 0.0, %v270
      %v272 = vpop.f32.mrf.mxu0
      %v273 = vadd.f32 0.0, %v272
      %274 = vmatmul.bf16.gmra.mxu0 %v259
      %v275 = vpop.f32.mrf.mxu0
      %v276 = vadd.f32 0.0, %v275
      %v277 = vpop.f32.mrf.mxu0
      %v278 = vadd.f32 0.0, %v277
      %279 = vdwg.mxu0
      %p280 = scmp.eq.s32.totalorder %s19, 0
      // Predicated region
      $region33: #{mm_forward.1} parent=31 // pred_check
        %p281 = pneg %p280
      $region34: #{mm_forward.1} parent=31 // pred_check_branch
        %283 = sbr.rel (%p281) target = $region36
      $region35: #{mm_forward.1} parent=31 // pred_region
        // Predicated region
        $region37: #{mm_forward.1} parent=35 // pred_check
          _
        $region38: #{mm_forward.1} parent=35 // pred_check_branch
          %285 = sbr.rel (%p222) target = $region40
        $region39: #{mm_forward.1} parent=35 // pred_region
          %vm286 = vcmask 7168
          %287 = vst.msk [vmem:[#allocation2] sm:$0xff] %vm286, 0.0
          %288 = vst.msk [vmem:[#allocation2 + $0x8] sm:$0xff] %vm286, 0.0
          %289 = vst.msk [vmem:[#allocation2 + $0x10] sm:$0xff] %vm286, 0.0
          %290 = vst.msk [vmem:[#allocation2 + $0x18] sm:$0xff] %vm286, 0.0
          %291 = vst.msk [vmem:[#allocation3] sm:$0xff] %vm286, 0.0
          %292 = vst.msk [vmem:[#allocation3 + $0x8] sm:$0xff] %vm286, 0.0
          %293 = vst.msk [vmem:[#allocation3 + $0x10] sm:$0xff] %vm286, 0.0
          %294 = vst.msk [vmem:[#allocation3 + $0x18] sm:$0xff] %vm286, 0.0
        $region40: #{mm_forward.1} parent=35 // pred_fallthru
          _
        %v295 = vld [vmem:[#allocation2] sm:$0xff]
        %v296 = vld [vmem:[#allocation2 + $0x8] sm:$0xff]
        %v297 = vld [vmem:[#allocation2 + $0x10] sm:$0xff]
        %v298 = vld [vmem:[#allocation2 + $0x18] sm:$0xff]
        %299 = vadd.xlane.f32.xlu0 %v271
        %v300 = vpop.xlane.xlu0 %299
        %301 = vadd.xlane.f32.xlu0 %v273
        %v302 = vpop.xlane.xlu0 %301
        %303 = vadd.xlane.f32.xlu0 %v276
        %v304 = vpop.xlane.xlu0 %303
        %305 = vadd.xlane.f32.xlu0 %v278
        %v306 = vpop.xlane.xlu0 %305
        %v307 = vadd.f32 %v295, %v300
        %v308 = vadd.f32 %v296, %v302
        %v309 = vadd.f32 %v297, %v304
        %v310 = vadd.f32 %v298, %v306
        %vm311 = vcmask 7168
        %312 = vst.msk [vmem:[#allocation2] sm:$0xff] %vm311, %v307
        %313 = vst.msk [vmem:[#allocation2 + $0x8] sm:$0xff] %vm311, %v308
        %314 = vst.msk [vmem:[#allocation2 + $0x10] sm:$0xff] %vm311, %v309
        %315 = vst.msk [vmem:[#allocation2 + $0x18] sm:$0xff] %vm311, %v310
        %v316 = vld [vmem:[#allocation3] sm:$0xff]
        %v317 = vld [vmem:[#allocation3 + $0x8] sm:$0xff]
        %v318 = vld [vmem:[#allocation3 + $0x10] sm:$0xff]
        %v319 = vld [vmem:[#allocation3 + $0x18] sm:$0xff]
        %v320 = vmul.f32 %v271, %v271
        %v321 = vmul.f32 %v273, %v273
        %v322 = vmul.f32 %v276, %v276
        %v323 = vmul.f32 %v278, %v278
        %324 = vadd.xlane.f32.xlu0 %v320
        %v325 = vpop.xlane.xlu0 %324
        %326 = vadd.xlane.f32.xlu0 %v321
        %v327 = vpop.xlane.xlu0 %326
        %328 = vadd.xlane.f32.xlu0 %v322
        %v329 = vpop.xlane.xlu0 %328
        %330 = vadd.xlane.f32.xlu0 %v323
        %v331 = vpop.xlane.xlu0 %330
        %v332 = vadd.f32 %v316, %v325
        %v333 = vadd.f32 %v317, %v327
        %v334 = vadd.f32 %v318, %v329
        %v335 = vadd.f32 %v319, %v331
        %336 = vst.msk [vmem:[#allocation3] sm:$0xff] %vm311, %v332
        %337 = vst.msk [vmem:[#allocation3 + $0x8] sm:$0xff] %vm311, %v333
        %338 = vst.msk [vmem:[#allocation3 + $0x10] sm:$0xff] %vm311, %v334
        %339 = vst.msk [vmem:[#allocation3 + $0x18] sm:$0xff] %vm311, %v335
      $region36: #{mm_forward.1} parent=31 // pred_fallthru
        _
      %p340 = scmp.eq.s32.totalorder %s19, 1
      // Predicated region
      $region41: #{mm_forward.1} parent=31 // pred_check
        %p341 = pneg %p340
      $region42: #{mm_forward.1} parent=31 // pred_check_branch
        %343 = sbr.rel (%p341) target = $region44
      $region43: #{mm_forward.1} parent=31 // pred_region
        // Predicated region
        $region45: #{mm_forward.1} parent=43 // pred_check
          _
        $region46: #{mm_forward.1} parent=43 // pred_check_branch
          %345 = sbr.rel (%p222) target = $region48
        $region47: #{mm_forward.1} parent=43 // pred_region
          %v346 = vld [vmem:[#allocation2] sm:$0xff]
          %v347 = vld [vmem:[#allocation2 + $0x8] sm:$0xff]
          %v348 = vld [vmem:[#allocation2 + $0x10] sm:$0xff]
          %v349 = vld [vmem:[#allocation2 + $0x18] sm:$0xff]
          %v350 = vmul.f32 %v346, 0.0078125
          %v351 = vmul.f32 %v347, 0.0078125
          %v352 = vmul.f32 %v348, 0.0078125
          %v353 = vmul.f32 %v349, 0.0078125
          %v354 = vld [vmem:[#allocation3] sm:$0xff]
          %v355 = vld [vmem:[#allocation3 + $0x8] sm:$0xff]
          %v356 = vld [vmem:[#allocation3 + $0x10] sm:$0xff]
          %v357 = vld [vmem:[#allocation3 + $0x18] sm:$0xff]
          %v358 = vmul.f32 %v354, 0.0078125
          %v359 = vmul.f32 %v355, 0.0078125
          %v360 = vmul.f32 %v356, 0.0078125
          %v361 = vmul.f32 %v357, 0.0078125
          %v362 = vmul.f32 %v350, %v350
          %v363 = vmul.f32 %v351, %v351
          %v364 = vmul.f32 %v352, %v352
          %v365 = vmul.f32 %v353, %v353
          %v366 = vsub.f32 %v358, %v362
          %v367 = vsub.f32 %v359, %v363
          %v368 = vsub.f32 %v360, %v364
          %v369 = vsub.f32 %v361, %v365
          %v370 = vmax.f32 %v366, 0.0
          %v371 = vmax.f32 %v367, 0.0
          %v372 = vmax.f32 %v368, 0.0
          %v373 = vmax.f32 %v369, 0.0
          %v374 = vld [vmem:[%s2] sm:$0xff]
          %v375 = vld [vmem:[%s2 + $0x8] sm:$0xff]
          %v376 = vld [vmem:[%s2 + $0x10] sm:$0xff]
          %v377 = vld [vmem:[%s2 + $0x18] sm:$0xff]
          %s378 = scalar_lea.vmem %s2, 32
          %v379 = vld [vmem:[%s378] sm:$0xff]
          %v380 = vld [vmem:[%s378 + $0x8] sm:$0xff]
          %v381 = vld [vmem:[%s378 + $0x10] sm:$0xff]
          %v382 = vld [vmem:[%s378 + $0x18] sm:$0xff]
          %v383 = vadd.f32 %v370, 1e-05
          %v384 = vadd.f32 %v371, 1e-05
          %v385 = vadd.f32 %v372, 1e-05
          %v386 = vadd.f32 %v373, 1e-05
          %v387 = vrsqrt.pop %v383
          %v388 = vmul.f32 %v387, %v383
          %v389 = vmul.f32 %v388, %v387
          %v390 = vmul.f32 0.5, %v389
          %v391 = vsub.f32 1.5, %v390
          %v392 = vmul.f32 %v387, %v391
          %vm393 = vweird.f32 %v383
          %vm394 = vweird.f32 %v387
          %vm395 = vmor %vm393, %vm394
          %v396 = vsel %vm395, %v387, %v392
          %v397 = vrsqrt.pop %v384
          %v398 = vmul.f32 %v397, %v384
          %v399 = vmul.f32 %v398, %v397
          %v400 = vmul.f32 0.5, %v399
          %v401 = vsub.f32 1.5, %v400
          %v402 = vmul.f32 %v397, %v401
          %vm403 = vweird.f32 %v384
          %vm404 = vweird.f32 %v397
          %vm405 = vmor %vm403, %vm404
          %v406 = vsel %vm405, %v397, %v402
          %v407 = vrsqrt.pop %v385
          %v408 = vmul.f32 %v407, %v385
          %v409 = vmul.f32 %v408, %v407
          %v410 = vmul.f32 0.5, %v409
          %v411 = vsub.f32 1.5, %v410
          %v412 = vmul.f32 %v407, %v411
          %vm413 = vweird.f32 %v385
          %vm414 = vweird.f32 %v407
          %vm415 = vmor %vm413, %vm414
          %v416 = vsel %vm415, %v407, %v412
          %v417 = vrsqrt.pop %v386
          %v418 = vmul.f32 %v417, %v386
          %v419 = vmul.f32 %v418, %v417
          %v420 = vmul.f32 0.5, %v419
          %v421 = vsub.f32 1.5, %v420
          %v422 = vmul.f32 %v417, %v421
          %vm423 = vweird.f32 %v386
          %vm424 = vweird.f32 %v417
          %vm425 = vmor %vm423, %vm424
          %v426 = vsel %vm425, %v417, %v422
          %v427 = vmul.f32 %v374, %v396
          %v428 = vmul.f32 %v375, %v406
          %v429 = vmul.f32 %v376, %v416
          %v430 = vmul.f32 %v377, %v426
          %vm431 = vcmask 7168
          %432 = vst.msk [vmem:[#allocation4] sm:$0xff] %vm431, %v427
          %433 = vst.msk [vmem:[#allocation4 + $0x8] sm:$0xff] %vm431, %v428
          %434 = vst.msk [vmem:[#allocation4 + $0x10] sm:$0xff] %vm431, %v429
          %435 = vst.msk [vmem:[#allocation4 + $0x18] sm:$0xff] %vm431, %v430
          %v436 = vmul.f32 %v350, %v427
          %v437 = vmul.f32 %v351, %v428
          %v438 = vmul.f32 %v352, %v429
          %v439 = vmul.f32 %v353, %v430
          %v440 = vsub.f32 %v379, %v436
          %v441 = vsub.f32 %v380, %v437
          %v442 = vsub.f32 %v381, %v438
          %v443 = vsub.f32 %v382, %v439
          %444 = vst.msk [vmem:[#allocation5] sm:$0xff] %vm431, %v440
          %445 = vst.msk [vmem:[#allocation5 + $0x8] sm:$0xff] %vm431, %v441
          %446 = vst.msk [vmem:[#allocation5 + $0x10] sm:$0xff] %vm431, %v442
          %447 = vst.msk [vmem:[#allocation5 + $0x18] sm:$0xff] %vm431, %v443
        $region48: #{mm_forward.1} parent=43 // pred_fallthru
          _
        %v448 = vld [vmem:[#allocation4] sm:$0xff]
        %v449 = vld [vmem:[#allocation4 + $0x8] sm:$0xff]
        %v450 = vld [vmem:[#allocation4 + $0x10] sm:$0xff]
        %v451 = vld [vmem:[#allocation4 + $0x18] sm:$0xff]
        %453 = vset.pattern.permute.xlu0 0
        %454 = vperm.xlu0 %453, %v448
        %v455 = vpop.permute.xlu0 %454
        %458 = vset.pattern.permute.xlu0 0
        %459 = vperm.xlu0 %458, %v449
        %v460 = vpop.permute.xlu0 %459
        %463 = vset.pattern.permute.xlu0 0
        %464 = vperm.xlu0 %463, %v450
        %v465 = vpop.permute.xlu0 %464
        %468 = vset.pattern.permute.xlu0 0
        %469 = vperm.xlu0 %468, %v451
        %v470 = vpop.permute.xlu0 %469
        %v472 = vmul.f32 %v271, %v455
        %v473 = vmul.f32 %v273, %v460
        %v474 = vmul.f32 %v276, %v465
        %v475 = vmul.f32 %v278, %v470
        %v476 = vld [vmem:[#allocation5] sm:$0xff]
        %v477 = vld [vmem:[#allocation5 + $0x8] sm:$0xff]
        %v478 = vld [vmem:[#allocation5 + $0x10] sm:$0xff]
        %v479 = vld [vmem:[#allocation5 + $0x18] sm:$0xff]
        %481 = vset.pattern.permute.xlu0 0
        %482 = vperm.xlu0 %481, %v476
        %v483 = vpop.permute.xlu0 %482
        %486 = vset.pattern.permute.xlu0 0
        %487 = vperm.xlu0 %486, %v477
        %v488 = vpop.permute.xlu0 %487
        %491 = vset.pattern.permute.xlu0 0
        %492 = vperm.xlu0 %491, %v478
        %v493 = vpop.permute.xlu0 %492
        %496 = vset.pattern.permute.xlu0 0
        %497 = vperm.xlu0 %496, %v479
        %v498 = vpop.permute.xlu0 %497
        %v500 = vadd.f32 %v472, %v483
        %v501 = vadd.f32 %v473, %v488
        %v502 = vadd.f32 %v474, %v493
        %v503 = vadd.f32 %v475, %v498
        %504 = vst [vmem:[%s216] sm:$0xff] %v500
        %505 = vst [vmem:[%s216 + $0x8] sm:$0xff] %v501
        %506 = vst [vmem:[%s216 + $0x10] sm:$0xff] %v502
        %507 = vst [vmem:[%s216 + $0x18] sm:$0xff] %v503
      $region44: #{mm_forward.1} parent=31 // pred_fallthru
        _
      %s508 = smul.u32 %s20, %s19
      %s509 = smul.u32 %s21, %s19
      %p510 = scmp.lt.s32.totalorder %s508, 1
      %s511 = scalar_select %p510, %s508, 1
      %p512 = scmp.lt.s32.totalorder %s509, 0
      %s513 = scalar_select %p512, %s509, 0
      %s514 = smul.addr %s511, 4
      %s515 = sadd.s32 %s513, %s514
      %s516 = smul.addr %s515, 8
      %s517 = scalar_lea.vmem %s3, %s516
      // Predicated region
      $region49: #{mm_forward.1} parent=31 // pred_check
        %p518 = pneg %p127
      $region50: #{mm_forward.1} parent=31 // pred_check_branch
        %520 = sbr.rel (%p518) target = $region52
      $region51: #{mm_forward.1} parent=31 // pred_region
        %s521 = smul.u32 %s20, %s19
        %s522 = smul.u32 %s21, %s19
      $region52: #{mm_forward.1} parent=31 // pred_fallthru
        _
    $region32: #{mm_forward.1} parent=5 // pred_fallthru
      _
    %p523 = scmp.le.s32.totalorder 2, %s9
    // Predicated region
    $region53: #{mm_forward.1} parent=5 // pred_check
      %p524 = pneg %p523
    $region54: #{mm_forward.1} parent=5 // pred_check_branch
      %526 = sbr.rel (%p524) target = $region56
    $region55: #{mm_forward.1} parent=5 // pred_region
      %s527 = ssub.s32 %s9, 2
      // Predicated region
      $region57: #{mm_forward.1} parent=55 // pred_check
        %p528 = pneg %p133
      $region58: #{mm_forward.1} parent=55 // pred_check_branch
        %530 = sbr.rel (%p528) target = $region60
      $region59: #{mm_forward.1} parent=55 // pred_region
        %s531 = smul.u32 %s23, %s22
        %s532 = smul.u32 %s24, %s22
        %p533 = scmp.lt.s32.totalorder %s531, 1
        %s534 = scalar_select %p533, %s531, 1
        %p535 = scmp.lt.s32.totalorder %s532, 0
        %s536 = scalar_select %p535, %s532, 0
        %s537 = smul.addr %s534, 4
        %s538 = sadd.s32 %s536, %s537
        %s539 = smul.addr %s538, 8
        %s540 = scalar_lea.vmem %s3, %s539
      $region60: #{mm_forward.1} parent=55 // pred_fallthru
        _
    $region56: #{mm_forward.1} parent=5 // pred_fallthru
      _
  $region6: #{mm_forward.1} parent=0 // loop_footer
    %s13 = sadd.s32 1, %s9
  $region7: #{mm_forward.1} parent=0 // loop_footer_branch
    %8 = sbr.rel target = $region3
  $region8: #{mm_forward.1} parent=0 // loop_exit
    _

</llo_original>
